<compile_context>
chip_gen: v6e
topology: v6e:2x2x1
jax: 0.10.0
libtpu: 0.0.40
codegen_flags: <defaults>
</compile_context>

<pallas_src>
import functools

import jax
import jax.numpy as jnp
import numpy as np
from jax.experimental import pallas as pl
from jax.experimental.pallas import tpu as pltpu

HIDDEN_LAYERS = 3  # mirrors the module-level global in the original code
LANE = 128
SUBLANE = 8


def _round_up(x, m):
    return ((x + m - 1) // m) * m


def _mlp_fused_kernel(x_ref, w_ref, b_ref, o_ref, *, n_layers):
    """Whole MLP forward for one (tm, D) batch tile.

    x_ref: (tm, D) activations, w_ref: (L, D, D) weights stored (fan_in, fan_out),
    b_ref: (L, 1, D) biases. Zero-padding is inert: padded K columns of x meet
    zero weight rows, padded output columns get zero weights + zero bias, and
    tanh(0) == 0 so zeros propagate cleanly layer to layer.
    """
    h = x_ref[...].astype(jnp.float32)
    for l in range(n_layers):  # static unroll: n_layers is a Python int
        h = jnp.dot(h, w_ref[l], preferred_element_type=jnp.float32) + b_ref[l]
        if l < n_layers - 1:
            h = jnp.tanh(h)  # fused activation (EUP), f32 throughout
    o_ref[...] = h.astype(o_ref.dtype)


@functools.partial(jax.jit, static_argnames=("d_out", "block_m"))
def mlp_net_forward(x, w_stack, b_stack, *, d_out, block_m=256):
    """MLPNet.forward: tanh after every layer except the output layer."""
    M, K = x.shape
    L, D, _ = w_stack.shape
    assert K <= D, "input feature dim exceeds packed/padded width"

    # Batch tiling: multiples of 8 sublanes; when the batch would otherwise be a
    # single tile, halve it so megacore (v7x, 2 TCs) gets >=2 parallel M-tiles.
    tm = min(block_m, _round_up(M, SUBLANE))
    if _round_up(M, tm) == tm and tm >= 2 * SUBLANE:
        tm = _round_up(tm // 2, SUBLANE)
    Mp = _round_up(M, tm)

    # Single activation pad per forward (params are pre-padded once, outside).
    xp = jnp.pad(x, ((0, Mp - M), (0, D - K))) if (Mp, D) != (M, K) else x

    out = pl.pallas_call(
        functools.partial(_mlp_fused_kernel, n_layers=L),
        out_shape=jax.ShapeDtypeStruct((Mp, D), x.dtype),
        grid_spec=pltpu.PrefetchScalarGridSpec(
            num_scalar_prefetch=0,
            grid=(Mp // tm,),
            in_specs=[
                pl.BlockSpec((tm, D), lambda i: (i, 0)),       # batch tile of x
                pl.BlockSpec((L, D, D), lambda i: (0, 0, 0)),  # all weights, VMEM-resident
                pl.BlockSpec((L, 1, D), lambda i: (0, 0, 0)),  # all biases, VMEM-resident
            ],
            out_specs=pl.BlockSpec((tm, D), lambda i: (i, 0)),
        ),
        compiler_params=pltpu.CompilerParams(
            dimension_semantics=("parallel",),
        ),
    )(xp, w_stack, b_stack)

    return out[:M, :d_out]


def make_mlp_params(d_in, d_out, d_hidden, key):
    """Parameters mirroring MLPNet.__init__.

    Weights are Xavier-uniform, biases PyTorch-default uniform(-1/sqrt(fan_in), ...).
    Weights are stored pre-transposed as (fan_in, fan_out) so the kernel consumes
    them directly on the MXU without any wrapper-side transpose.
    """
    dims = (
        [(d_in, d_hidden)]
        + [(d_hidden, d_hidden)] * (HIDDEN_LAYERS - 1)
        + [(d_hidden, d_out)]
    )
    params = []
    for fan_in, fan_out in dims:
        key, kw, kb = jax.random.split(key, 3)
        w_bound = float(np.sqrt(6.0 / (fan_in + fan_out)))
        wT = jax.random.uniform(kw, (fan_in, fan_out), jnp.float32, -w_bound, w_bound)
        b_bound = 1.0 / float(np.sqrt(fan_in))
        b = jax.random.uniform(kb, (fan_out,), jnp.float32, -b_bound, b_bound)
        params.append((wT, b))
    return params


def pack_params(params):
    """One-time padding/stacking of all layer params to (L, D, D) / (L, 1, D).

    Done once at model setup so the per-forward path never pads weights again.
    """
    D = max(
        max(_round_up(wT.shape[0], LANE), _round_up(wT.shape[1], LANE))
        for wT, _ in params
    )
    L = len(params)
    w_stack = np.zeros((L, D, D), np.float32)
    b_stack = np.zeros((L, 1, D), np.float32)
    for l, (wT, b) in enumerate(params):
        w_np = np.asarray(wT)
        b_np = np.asarray(b)
        w_stack[l, : w_np.shape[0], : w_np.shape[1]] = w_np
        b_stack[l, 0, : b_np.shape[0]] = b_np
    return jnp.asarray(w_stack), jnp.asarray(b_stack)


if __name__ == "__main__":
    # Small shapes consistent with the module: (batch, d_in) -> (batch, d_out).
    batch, d_in, d_hidden, d_out = 16, 32, 64, 8

    key = jax.random.PRNGKey(0)
    kx, kp = jax.random.split(key)

    x = jax.random.normal(kx, (batch, d_in), dtype=jnp.float32)
    params = make_mlp_params(d_in, d_out, d_hidden, kp)
    w_stack, b_stack = pack_params(params)  # one-time pad + stack

    y = jax.block_until_ready(mlp_net_forward(x, w_stack, b_stack, d_out=d_out))

    # Pure-JAX reference of the same forward pass (unpadded params).
    ref = x
    n_layers = len(params)
    for i, (wT, b) in enumerate(params):
        ref = ref @ wT + b
        if i < n_layers - 1:
            ref = jnp.tanh(ref)

    np.testing.assert_allclose(np.asarray(y), np.asarray(ref), rtol=1e-5, atol=1e-5)
    print("KERNEL_OK")
</pallas_src>

<mosaic_0001>
module attributes {stable_mosaic.version = 11 : i64} {
  func.func @_mlp_fused_kernel(%arg0: i32, %arg1: memref<8x128xf32, #tpu.memory_space<vmem>>, %arg2: memref<4x128x128xf32, #tpu.memory_space<vmem>>, %arg3: memref<4x1x128xf32, #tpu.memory_space<vmem>>, %arg4: memref<8x128xf32, #tpu.memory_space<vmem>>) attributes {dimension_semantics = [#tpu.dimension_semantics<parallel>], iteration_bounds = array<i64: 2>, scalar_prefetch = 0 : i64, scratch_operands = 0 : i64, tpu.core_type = #tpu.core_type<tc>, window_params = [{transform_indices = @transform_0, window_bounds = array<i64: 8, 128>}, {pipeline_mode = #tpu.pipeline_mode<synchronous>, transform_indices = @transform_1, window_bounds = array<i64: 4, 128, 128>}, {pipeline_mode = #tpu.pipeline_mode<synchronous>, transform_indices = @transform_2, window_bounds = array<i64: 4, 1, 128>}, {transform_indices = @transform_3, window_bounds = array<i64: 8, 128>}]} {
    %c0 = arith.constant 0 : index
    %c0_0 = arith.constant 0 : index
    %0 = vector.load %arg1[%c0, %c0_0] : memref<8x128xf32, #tpu.memory_space<vmem>>, vector<8x128xf32>
    %c0_1 = arith.constant 0 : index
    %c0_2 = arith.constant 0 : index
    %c0_3 = arith.constant 0 : index
    %1 = vector.load %arg2[%c0_1, %c0_2, %c0_3] : memref<4x128x128xf32, #tpu.memory_space<vmem>>, vector<1x128x128xf32>
    %2 = vector.shape_cast %1 : vector<1x128x128xf32> to vector<128x128xf32>
    %cst = arith.constant dense<0.000000e+00> : vector<8x128xf32>
    %3 = tpu.matmul %0, %2, %cst {dimension_numbers = #tpu.dot_dimension_numbers<[1], [0], [0], [1], [0, 0, 1, 1], [], []>} : vector<8x128xf32>, vector<128x128xf32>, vector<8x128xf32> -> vector<8x128xf32>
    %c0_4 = arith.constant 0 : index
    %c0_5 = arith.constant 0 : index
    %c0_6 = arith.constant 0 : index
    %4 = vector.load %arg3[%c0_4, %c0_5, %c0_6] : memref<4x1x128xf32, #tpu.memory_space<vmem>>, vector<1x1x128xf32>
    %5 = vector.shape_cast %4 : vector<1x1x128xf32> to vector<1x128xf32>
    %6 = vector.broadcast %5 : vector<1x128xf32> to vector<8x128xf32>
    %7 = arith.addf %3, %6 : vector<8x128xf32>
    %8 = math.tanh %7 : vector<8x128xf32>
    %c1 = arith.constant 1 : index
    %c0_7 = arith.constant 0 : index
    %c0_8 = arith.constant 0 : index
    %9 = vector.load %arg2[%c1, %c0_7, %c0_8] : memref<4x128x128xf32, #tpu.memory_space<vmem>>, vector<1x128x128xf32>
    %10 = vector.shape_cast %9 : vector<1x128x128xf32> to vector<128x128xf32>
    %cst_9 = arith.constant dense<0.000000e+00> : vector<8x128xf32>
    %11 = tpu.matmul %8, %10, %cst_9 {dimension_numbers = #tpu.dot_dimension_numbers<[1], [0], [0], [1], [0, 0, 1, 1], [], []>} : vector<8x128xf32>, vector<128x128xf32>, vector<8x128xf32> -> vector<8x128xf32>
    %c1_10 = arith.constant 1 : index
    %c0_11 = arith.constant 0 : index
    %c0_12 = arith.constant 0 : index
    %12 = vector.load %arg3[%c1_10, %c0_11, %c0_12] : memref<4x1x128xf32, #tpu.memory_space<vmem>>, vector<1x1x128xf32>
    %13 = vector.shape_cast %12 : vector<1x1x128xf32> to vector<1x128xf32>
    %14 = vector.broadcast %13 : vector<1x128xf32> to vector<8x128xf32>
    %15 = arith.addf %11, %14 : vector<8x128xf32>
    %16 = math.tanh %15 : vector<8x128xf32>
    %c2 = arith.constant 2 : index
    %c0_13 = arith.constant 0 : index
    %c0_14 = arith.constant 0 : index
    %17 = vector.load %arg2[%c2, %c0_13, %c0_14] : memref<4x128x128xf32, #tpu.memory_space<vmem>>, vector<1x128x128xf32>
    %18 = vector.shape_cast %17 : vector<1x128x128xf32> to vector<128x128xf32>
    %cst_15 = arith.constant dense<0.000000e+00> : vector<8x128xf32>
    %19 = tpu.matmul %16, %18, %cst_15 {dimension_numbers = #tpu.dot_dimension_numbers<[1], [0], [0], [1], [0, 0, 1, 1], [], []>} : vector<8x128xf32>, vector<128x128xf32>, vector<8x128xf32> -> vector<8x128xf32>
    %c2_16 = arith.constant 2 : index
    %c0_17 = arith.constant 0 : index
    %c0_18 = arith.constant 0 : index
    %20 = vector.load %arg3[%c2_16, %c0_17, %c0_18] : memref<4x1x128xf32, #tpu.memory_space<vmem>>, vector<1x1x128xf32>
    %21 = vector.shape_cast %20 : vector<1x1x128xf32> to vector<1x128xf32>
    %22 = vector.broadcast %21 : vector<1x128xf32> to vector<8x128xf32>
    %23 = arith.addf %19, %22 : vector<8x128xf32>
    %24 = math.tanh %23 : vector<8x128xf32>
    %c3 = arith.constant 3 : index
    %c0_19 = arith.constant 0 : index
    %c0_20 = arith.constant 0 : index
    %25 = vector.load %arg2[%c3, %c0_19, %c0_20] : memref<4x128x128xf32, #tpu.memory_space<vmem>>, vector<1x128x128xf32>
    %26 = vector.shape_cast %25 : vector<1x128x128xf32> to vector<128x128xf32>
    %cst_21 = arith.constant dense<0.000000e+00> : vector<8x128xf32>
    %27 = tpu.matmul %24, %26, %cst_21 {dimension_numbers = #tpu.dot_dimension_numbers<[1], [0], [0], [1], [0, 0, 1, 1], [], []>} : vector<8x128xf32>, vector<128x128xf32>, vector<8x128xf32> -> vector<8x128xf32>
    %c3_22 = arith.constant 3 : index
    %c0_23 = arith.constant 0 : index
    %c0_24 = arith.constant 0 : index
    %28 = vector.load %arg3[%c3_22, %c0_23, %c0_24] : memref<4x1x128xf32, #tpu.memory_space<vmem>>, vector<1x1x128xf32>
    %29 = vector.shape_cast %28 : vector<1x1x128xf32> to vector<1x128xf32>
    %30 = vector.broadcast %29 : vector<1x128xf32> to vector<8x128xf32>
    %31 = arith.addf %27, %30 : vector<8x128xf32>
    %c0_25 = arith.constant 0 : index
    %c0_26 = arith.constant 0 : index
    %32 = vector.load %arg4[%c0_25, %c0_26] : memref<8x128xf32, #tpu.memory_space<vmem>>, vector<8x128xf32>
    tpu.vector_store %arg4[%c0_25, %c0_26], %31 {strides = array<i32>} : memref<8x128xf32, #tpu.memory_space<vmem>>, vector<8x128xf32>,
    return
  }
  func.func @transform_0(%arg0: i32) -> (i32, i32) {
    %c0_i32 = arith.constant 0 : i32
    %c0_i32_0 = arith.constant 0 : i32
    return %arg0, %c0_i32 : i32, i32
  }
  func.func @transform_1(%arg0: i32) -> (i32, i32, i32) {
    %c0_i32 = arith.constant 0 : i32
    %c0_i32_0 = arith.constant 0 : i32
    %c0_i32_1 = arith.constant 0 : i32
    %c0_i32_2 = arith.constant 0 : i32
    return %c0_i32, %c0_i32_0, %c0_i32_1 : i32, i32, i32
  }
  func.func @transform_2(%arg0: i32) -> (i32, i32, i32) {
    %c0_i32 = arith.constant 0 : i32
    %c0_i32_0 = arith.constant 0 : i32
    %c0_i32_1 = arith.constant 0 : i32
    %c0_i32_2 = arith.constant 0 : i32
    return %c0_i32, %c0_i32_0, %c0_i32_1 : i32, i32, i32
  }
  func.func @transform_3(%arg0: i32) -> (i32, i32) {
    %c0_i32 = arith.constant 0 : i32
    %c0_i32_0 = arith.constant 0 : i32
    return %arg0, %c0_i32 : i32, i32
  }
}

</mosaic_0001>

<llo_original>
// kernel: mlp_net_forward.1
$region0: #{mlp_net_forward.1}
  #allocation0 [shape = 'u32[]', space=smem, size = 0x4, offset = 0x4, fixed_abs, tag = 'smem constant byte address 0x4 - core index']
  #allocation1 [shape = 'u32[144,128]{1,0:T(1,128)}', space=vmem, size = 0x12000, scoped, tag = 'internal scratch']
  %s0 = inlined_call_operand.vmem [shape: f32[16,128], index: 0, kind: input, shape index: {}]
  %s1 = inlined_call_operand.hbm [shape: f32[4,128,128], index: 1, kind: input, shape index: {}]
  %s2 = inlined_call_operand.vmem [shape: f32[4,1,128], index: 2, kind: input, shape index: {}]
  %s3 = inlined_call_operand.vmem [shape: f32[16,128], index: 3, kind: output, shape index: {}]
  %s4 = sld [smem:[#allocation0]]
  $region49: #{mlp_net_forward.1} parent=0
    _
  %s6 = ssub.s32 1, %s4
  %s7 = scalar_select 0, %s6, %s4
  $region1: #{mlp_net_forward.1} parent=0
    #allocation2 [shape = 'u8[262144]{0}', space=vmem, size = 0x40000, scoped, tag = 'input window, operand 1, single buffered']
    #allocation3 [shape = 's32[2]{0}', space=sflag, size = 0x8, scoped, tag = 'scoped memory for mlp_net_forward.1']
    %8 = vsyncpa [#allocation3], 0
    loop: start=0, step=1, limit=4
    $region2: #{mlp_net_forward.1} parent=1 // loop_pre_header
      _
    $region3: #{mlp_net_forward.1} parent=1 // loop_header
      %s10 = sphi 0, %s14
      %p11 = scmp.ge.s32.totalorder %s10, 4
      %s20 = sphi 0, %s22
      %s23 = sphi 0, %s20
      %s24 = sphi 0, %s23
      %s40 = sphi 0, %s24
      %s44 = sphi 0, %s44
      %s46 = sphi 0, %s44
      %s47 = sphi 0, %s46
      %s61 = sphi 0, %s47
      %s65 = sphi 0, %s65
      %s67 = sphi 0, %s65
      %s68 = sphi 0, %s67
      %s82 = sphi 0, %s68
      %s88 = sphi 0, %s90
      %s91 = sphi 0, %s88
      %s92 = sphi 0, %s91
      %s108 = sphi 0, %s92
    $region4: #{mlp_net_forward.1} parent=1 // loop_header_branch
      %13 = sbr.rel (%p11) target = $region8
    $region5: #{mlp_net_forward.1} parent=1 // loop_body
      %s15 = ssub.s32 %s10, 1
      %s16 = ssub.s32 %s10, 2
      %s17 = sadd.s32 %s10, 1
      %s18 = ssub.s32 %s10, %s17
      %p19 = scmp.eq.s32.totalorder %s18, 0
      %s21 = sadd.s32 %s20, 1
      %s22 = scalar_select %p19, %s20, %s21
      %p25 = pneg %p19
      %p26 = scmp.eq.s32.totalorder %s10, 1
      %p27 = por %p25, %p26
      %p28 = scmp.ne.s32.totalorder %s20, %s23
      %p29 = scmp.eq.s32.totalorder %s10, 0
      %p30 = por %p28, %p29
      %p31 = scmp.ne.s32.totalorder %s20, %s23
      %p32 = scmp.eq.s32.totalorder %s15, 1
      %p33 = por %p31, %p32
      %p34 = scmp.ne.s32.totalorder %s23, %s24
      %p35 = scmp.eq.s32.totalorder %s15, 0
      %p36 = por %p34, %p35
      %p37 = scmp.ne.s32.totalorder %s23, %s24
      %p38 = scmp.eq.s32.totalorder %s16, 1
      %p39 = por %p37, %p38
      %p41 = scmp.ne.s32.totalorder %s24, %s40
      %p42 = scmp.eq.s32.totalorder %s16, 0
      %p43 = por %p41, %p42
      %s45 = sadd.s32 %s44, 1
      %p48 = scmp.eq.s32.totalorder %s10, 1
      %p49 = scmp.ne.s32.totalorder %s44, %s46
      %p50 = scmp.eq.s32.totalorder %s10, 0
      %p51 = por %p49, %p50
      %p52 = scmp.ne.s32.totalorder %s44, %s46
      %p53 = scmp.eq.s32.totalorder %s15, 1
      %p54 = por %p52, %p53
      %p55 = scmp.ne.s32.totalorder %s46, %s47
      %p56 = scmp.eq.s32.totalorder %s15, 0
      %p57 = por %p55, %p56
      %p58 = scmp.ne.s32.totalorder %s46, %s47
      %p59 = scmp.eq.s32.totalorder %s16, 1
      %p60 = por %p58, %p59
      %p62 = scmp.ne.s32.totalorder %s47, %s61
      %p63 = scmp.eq.s32.totalorder %s16, 0
      %p64 = por %p62, %p63
      %s66 = sadd.s32 %s65, 1
      %p69 = scmp.eq.s32.totalorder %s10, 1
      %p70 = scmp.ne.s32.totalorder %s65, %s67
      %p71 = scmp.eq.s32.totalorder %s10, 0
      %p72 = por %p70, %p71
      %p73 = scmp.ne.s32.totalorder %s65, %s67
      %p74 = scmp.eq.s32.totalorder %s15, 1
      %p75 = por %p73, %p74
      %p76 = scmp.ne.s32.totalorder %s67, %s68
      %p77 = scmp.eq.s32.totalorder %s15, 0
      %p78 = por %p76, %p77
      %p79 = scmp.ne.s32.totalorder %s67, %s68
      %p80 = scmp.eq.s32.totalorder %s16, 1
      %p81 = por %p79, %p80
      %p83 = scmp.ne.s32.totalorder %s68, %s82
      %p84 = scmp.eq.s32.totalorder %s16, 0
      %p85 = por %p83, %p84
      %s86 = ssub.s32 %s10, %s17
      %p87 = scmp.eq.s32.totalorder %s86, 0
      %s89 = sadd.s32 %s88, 1
      %s90 = scalar_select %p87, %s88, %s89
      %p93 = pneg %p87
      %p94 = scmp.eq.s32.totalorder %s10, 1
      %p95 = por %p93, %p94
      %p96 = scmp.ne.s32.totalorder %s88, %s91
      %p97 = scmp.eq.s32.totalorder %s10, 0
      %p98 = por %p96, %p97
      %p99 = scmp.ne.s32.totalorder %s88, %s91
      %p100 = scmp.eq.s32.totalorder %s15, 1
      %p101 = por %p99, %p100
      %p102 = scmp.ne.s32.totalorder %s91, %s92
      %p103 = scmp.eq.s32.totalorder %s15, 0
      %p104 = por %p102, %p103
      %p105 = scmp.ne.s32.totalorder %s91, %s92
      %p106 = scmp.eq.s32.totalorder %s16, 1
      %p107 = por %p105, %p106
      %p109 = scmp.ne.s32.totalorder %s92, %s108
      %p110 = scmp.eq.s32.totalorder %s16, 0
      %p111 = por %p109, %p110
      %p112 = scmp.le.s32.totalorder 1, %s10
      %p113 = scmp.lt.s32.totalorder %s10, 3
      %p114 = pnand %p112, %p113
      %p115 = pneg %p114
      // Predicated region
      $region9: #{mlp_net_forward.1} parent=5 // pred_check
        _
      $region10: #{mlp_net_forward.1} parent=5 // pred_check_branch
        %117 = sbr.rel (%p114) target = $region12
      $region11: #{mlp_net_forward.1} parent=5 // pred_region
        %s118 = ssub.s32 %s10, 1
        // Predicated region
        $region13: #{mlp_net_forward.1} parent=11 // pred_check
          %p119 = pneg %p57
        $region14: #{mlp_net_forward.1} parent=11 // pred_check_branch
          %121 = sbr.rel (%p119) target = $region16
        $region15: #{mlp_net_forward.1} parent=11 // pred_region
          %s123 = ssub.s32 8192, 8192
          %124 = vsyncadd [#allocation3], %s123
          %s125 = sshll.u32 [#allocation2], 4
          %s126 = int_to_ptr.vmem [resolvable:$true] %s125
          %131 = dma.hbm_to_vmem [thread:$0]  %s1, 8192, %s126, [#allocation3], 128, 128, 8
        $region16: #{mlp_net_forward.1} parent=11 // pred_fallthru
          _
        // Predicated region
        $region17: #{mlp_net_forward.1} parent=11 // pred_check
          %p132 = pneg %p78
        $region18: #{mlp_net_forward.1} parent=11 // pred_check_branch
          %134 = sbr.rel (%p132) target = $region20
        $region19: #{mlp_net_forward.1} parent=11 // pred_region
          _
        $region20: #{mlp_net_forward.1} parent=11 // pred_fallthru
          _
      $region12: #{mlp_net_forward.1} parent=5 // pred_fallthru
        _
      %p135 = scmp.lt.s32.totalorder %s10, 2
      // Predicated region
      $region21: #{mlp_net_forward.1} parent=5 // pred_check
        %p136 = pneg %p135
      $region22: #{mlp_net_forward.1} parent=5 // pred_check_branch
        %138 = sbr.rel (%p136) target = $region24
      $region23: #{mlp_net_forward.1} parent=5 // pred_region
        // Predicated region
        $region25: #{mlp_net_forward.1} parent=23 // pred_check
          %p139 = pneg %p30
        $region26: #{mlp_net_forward.1} parent=23 // pred_check_branch
          %141 = sbr.rel (%p139) target = $region28
        $region27: #{mlp_net_forward.1} parent=23 // pred_region
          %p142 = scmp.lt.s32.totalorder %s10, 1
          %s143 = scalar_select %p142, %s10, 1
          %s144 = smul.addr %s143, 8
          %s145 = scalar_lea.vmem %s0, %s144
        $region28: #{mlp_net_forward.1} parent=23 // pred_fallthru
          _
      $region24: #{mlp_net_forward.1} parent=5 // pred_fallthru
        _
      %p146 = scmp.le.s32.totalorder 1, %s10
      %p147 = scmp.lt.s32.totalorder %s10, 3
      %p148 = pnand %p146, %p147
      %p149 = pneg %p148
      // Predicated region
      $region29: #{mlp_net_forward.1} parent=5 // pred_check
        _
      $region30: #{mlp_net_forward.1} parent=5 // pred_check_branch
        %151 = sbr.rel (%p148) target = $region32
      $region31: #{mlp_net_forward.1} parent=5 // pred_region
        %s152 = ssub.s32 %s10, 1
        // Predicated region
        $region33: #{mlp_net_forward.1} parent=31 // pred_check
          %p153 = pneg %p57
        $region34: #{mlp_net_forward.1} parent=31 // pred_check_branch
          %155 = sbr.rel (%p153) target = $region36
        $region35: #{mlp_net_forward.1} parent=31 // pred_region
          %156 = dma.done [#allocation3], 8192
        $region36: #{mlp_net_forward.1} parent=31 // pred_fallthru
          _
        %p157 = scmp.lt.s32.totalorder %s15, 1
        %s158 = scalar_select %p157, %s15, 1
        %s159 = smul.addr %s158, 8
        %s160 = scalar_lea.vmem %s0, %s159
        %p161 = pneg %p36
        %p162 = pneg %p33
        %p163 = pneg %p57
        %p164 = pneg %p54
        %p165 = pneg %p78
        %p166 = pneg %p75
        %p167 = pneg %p104
        %p168 = pneg %p101
        %p169 = scmp.lt.s32.totalorder %s15, 1
        %s170 = scalar_select %p169, %s15, 1
        %s171 = smul.addr %s170, 8
        %s172 = scalar_lea.vmem %s3, %s171
        %p173 = scmp.lt.s32.totalorder %s15, 1
        %s174 = scalar_select %p173, %s15, 1
        %s175 = smul.addr %s174, 8
        %s176 = scalar_lea.vmem %s0, %s175
        %p177 = scmp.lt.s32.totalorder %s15, 1
        %s178 = scalar_select %p177, %s15, 1
        %s179 = smul.addr %s178, 8
        %s180 = scalar_lea.vmem %s3, %s179
        %v181 = vld [vmem:[%s176] sm:$0xff]
        %v182 = vld [vmem:[#allocation2] sm:$0xff]
        %v183 = vld [vmem:[#allocation2 + $0x8] sm:$0xff]
        %v184 = vld [vmem:[#allocation2 + $0x10] sm:$0xff]
        %v185 = vld [vmem:[#allocation2 + $0x18] sm:$0xff]
        %v186 = vld [vmem:[#allocation2 + $0x20] sm:$0xff]
        %v187 = vld [vmem:[#allocation2 + $0x28] sm:$0xff]
        %v188 = vld [vmem:[#allocation2 + $0x30] sm:$0xff]
        %v189 = vld [vmem:[#allocation2 + $0x38] sm:$0xff]
        %v190 = vld [vmem:[#allocation2 + $0x40] sm:$0xff]
        %v191 = vld [vmem:[#allocation2 + $0x48] sm:$0xff]
        %v192 = vld [vmem:[#allocation2 + $0x50] sm:$0xff]
        %v193 = vld [vmem:[#allocation2 + $0x58] sm:$0xff]
        %v194 = vld [vmem:[#allocation2 + $0x60] sm:$0xff]
        %v195 = vld [vmem:[#allocation2 + $0x68] sm:$0xff]
        %v196 = vld [vmem:[#allocation2 + $0x70] sm:$0xff]
        %v197 = vld [vmem:[#allocation2 + $0x78] sm:$0xff]
        %v198 = vld [vmem:[%s2] sm:$0x1]
        %v200 = vlaneseq
        %v201 = vshrl.u32 %v200, 7
        %v202 = vsub.s32 0, %v201
        %v203 = vrot.slane %v198, %v202
        %205 = vmatprep.subr.mxu0 0.0
        %206 = vmatpush1.msra.mxu0 %v197
        %207 = vmatprep.subr.mxu0 0.0
        %208 = vmatpush1.msra.mxu0 %v196
        %209 = vmatprep.subr.mxu0 0.0
        %210 = vmatpush1.msra.mxu0 %v195
        %211 = vmatprep.subr.mxu0 0.0
        %212 = vmatpush1.msra.mxu0 %v194
        %213 = vmatprep.subr.mxu0 0.0
        %214 = vmatpush1.msra.mxu0 %v193
        %215 = vmatprep.subr.mxu0 0.0
        %216 = vmatpush1.msra.mxu0 %v192
        %217 = vmatprep.subr.mxu0 0.0
        %218 = vmatpush1.msra.mxu0 %v191
        %219 = vmatprep.subr.mxu0 0.0
        %220 = vmatpush1.msra.mxu0 %v190
        %221 = vmatprep.subr.mxu0 0.0
        %222 = vmatpush1.msra.mxu0 %v189
        %223 = vmatprep.subr.mxu0 0.0
        %224 = vmatpush1.msra.mxu0 %v188
        %225 = vmatprep.subr.mxu0 0.0
        %226 = vmatpush1.msra.mxu0 %v187
        %227 = vmatprep.subr.mxu0 0.0
        %228 = vmatpush1.msra.mxu0 %v186
        %229 = vmatprep.subr.mxu0 0.0
        %230 = vmatpush1.msra.mxu0 %v185
        %231 = vmatprep.subr.mxu0 0.0
        %232 = vmatpush1.msra.mxu0 %v184
        %233 = vmatprep.subr.mxu0 0.0
        %234 = vmatpush1.msra.mxu0 %v183
        %235 = vmatprep.subr.mxu0 0.0
        %236 = vmatpush1.msra.mxu0 %v182
        %237 = vmatprep.subr.mxu0 0.0
        %238 = vmatpush2.msra.mxu0 0.0
        %239 = vmatprep.subr.mxu0 0.0
        %240 = vmatpush2.msra.mxu0 0.0
        %241 = vmatprep.subr.mxu0 0.0
        %242 = vmatpush2.msra.mxu0 0.0
        %243 = vmatprep.subr.mxu0 0.0
        %244 = vmatpush2.msra.mxu0 0.0
        %245 = vmatprep.subr.mxu0 0.0
        %246 = vmatpush2.msra.mxu0 0.0
        %247 = vmatprep.subr.mxu0 0.0
        %248 = vmatpush2.msra.mxu0 0.0
        %249 = vmatprep.subr.mxu0 0.0
        %250 = vmatpush2.msra.mxu0 0.0
        %251 = vmatprep.subr.mxu0 0.0
        %252 = vmatpush2.msra.mxu0 0.0
        %253 = vmatprep.subr.mxu0 0.0
        %254 = vmatpush2.msra.mxu0 0.0
        %255 = vmatprep.subr.mxu0 0.0
        %256 = vmatpush2.msra.mxu0 0.0
        %257 = vmatprep.subr.mxu0 0.0
        %258 = vmatpush2.msra.mxu0 0.0
        %259 = vmatprep.subr.mxu0 0.0
        %260 = vmatpush2.msra.mxu0 0.0
        %261 = vmatprep.subr.mxu0 0.0
        %262 = vmatpush2.msra.mxu0 0.0
        %263 = vmatprep.subr.mxu0 0.0
        %264 = vmatpush2.msra.mxu0 0.0
        %265 = vmatprep.subr.mxu0 0.0
        %266 = vmatpush2.msra.mxu0 0.0
        %267 = vmatprep.subr.mxu0 0.0
        %268 = vmatpush2.msra.mxu0 0.0
        %269 = vmatprep.mubr.f32.mxu0 0.0
        %270 = vmatmul.mubr.f32.gmra.mxu0 %v181
        %v271 = vpop.f32.mrf.mxu0
        %v272 = vadd.f32 %v203, %v271
        %v273 = vpop.f32.mrf.mxu0
        %274 = vdwg.mxu0
        %v275 = vtanh.pop %v272
        %s276 = scalar_lea.vmem [#allocation2], 128
        %v277 = vld [vmem:[%s276] sm:$0xff]
        %v278 = vld [vmem:[%s276 + $0x8] sm:$0xff]
        %v279 = vld [vmem:[%s276 + $0x10] sm:$0xff]
        %v280 = vld [vmem:[%s276 + $0x18] sm:$0xff]
        %v281 = vld [vmem:[%s276 + $0x20] sm:$0xff]
        %v282 = vld [vmem:[%s276 + $0x28] sm:$0xff]
        %v283 = vld [vmem:[%s276 + $0x30] sm:$0xff]
        %v284 = vld [vmem:[%s276 + $0x38] sm:$0xff]
        %v285 = vld [vmem:[%s276 + $0x40] sm:$0xff]
        %v286 = vld [vmem:[%s276 + $0x48] sm:$0xff]
        %v287 = vld [vmem:[%s276 + $0x50] sm:$0xff]
        %v288 = vld [vmem:[%s276 + $0x58] sm:$0xff]
        %v289 = vld [vmem:[%s276 + $0x60] sm:$0xff]
        %v290 = vld [vmem:[%s276 + $0x68] sm:$0xff]
        %v291 = vld [vmem:[%s276 + $0x70] sm:$0xff]
        %v292 = vld [vmem:[%s276 + $0x78] sm:$0xff]
        %s293 = scalar_lea.vmem %s2, 1
        %v294 = vld [vmem:[%s293] sm:$0x1]
        %v296 = vlaneseq
        %v297 = vshrl.u32 %v296, 7
        %v298 = vsub.s32 0, %v297
        %v299 = vrot.slane %v294, %v298
        %301 = vmatprep.subr.mxu0 0.0
        %302 = vmatpush1.msra.mxu0 %v292
        %303 = vmatprep.subr.mxu0 0.0
        %304 = vmatpush1.msra.mxu0 %v291
        %305 = vmatprep.subr.mxu0 0.0
        %306 = vmatpush1.msra.mxu0 %v290
        %307 = vmatprep.subr.mxu0 0.0
        %308 = vmatpush1.msra.mxu0 %v289
        %309 = vmatprep.subr.mxu0 0.0
        %310 = vmatpush1.msra.mxu0 %v288
        %311 = vmatprep.subr.mxu0 0.0
        %312 = vmatpush1.msra.mxu0 %v287
        %313 = vmatprep.subr.mxu0 0.0
        %314 = vmatpush1.msra.mxu0 %v286
        %315 = vmatprep.subr.mxu0 0.0
        %316 = vmatpush1.msra.mxu0 %v285
        %317 = vmatprep.subr.mxu0 0.0
        %318 = vmatpush1.msra.mxu0 %v284
        %319 = vmatprep.subr.mxu0 0.0
        %320 = vmatpush1.msra.mxu0 %v283
        %321 = vmatprep.subr.mxu0 0.0
        %322 = vmatpush1.msra.mxu0 %v282
        %323 = vmatprep.subr.mxu0 0.0
        %324 = vmatpush1.msra.mxu0 %v281
        %325 = vmatprep.subr.mxu0 0.0
        %326 = vmatpush1.msra.mxu0 %v280
        %327 = vmatprep.subr.mxu0 0.0
        %328 = vmatpush1.msra.mxu0 %v279
        %329 = vmatprep.subr.mxu0 0.0
        %330 = vmatpush1.msra.mxu0 %v278
        %331 = vmatprep.subr.mxu0 0.0
        %332 = vmatpush1.msra.mxu0 %v277
        %333 = vmatprep.subr.mxu0 0.0
        %334 = vmatpush2.msra.mxu0 0.0
        %335 = vmatprep.subr.mxu0 0.0
        %336 = vmatpush2.msra.mxu0 0.0
        %337 = vmatprep.subr.mxu0 0.0
        %338 = vmatpush2.msra.mxu0 0.0
        %339 = vmatprep.subr.mxu0 0.0
        %340 = vmatpush2.msra.mxu0 0.0
        %341 = vmatprep.subr.mxu0 0.0
        %342 = vmatpush2.msra.mxu0 0.0
        %343 = vmatprep.subr.mxu0 0.0
        %344 = vmatpush2.msra.mxu0 0.0
        %345 = vmatprep.subr.mxu0 0.0
        %346 = vmatpush2.msra.mxu0 0.0
        %347 = vmatprep.subr.mxu0 0.0
        %348 = vmatpush2.msra.mxu0 0.0
        %349 = vmatprep.subr.mxu0 0.0
        %350 = vmatpush2.msra.mxu0 0.0
        %351 = vmatprep.subr.mxu0 0.0
        %352 = vmatpush2.msra.mxu0 0.0
        %353 = vmatprep.subr.mxu0 0.0
        %354 = vmatpush2.msra.mxu0 0.0
        %355 = vmatprep.subr.mxu0 0.0
        %356 = vmatpush2.msra.mxu0 0.0
        %357 = vmatprep.subr.mxu0 0.0
        %358 = vmatpush2.msra.mxu0 0.0
        %359 = vmatprep.subr.mxu0 0.0
        %360 = vmatpush2.msra.mxu0 0.0
        %361 = vmatprep.subr.mxu0 0.0
        %362 = vmatpush2.msra.mxu0 0.0
        %363 = vmatprep.subr.mxu0 0.0
        %364 = vmatpush2.msra.mxu0 0.0
        %365 = vmatprep.mubr.f32.mxu0 0.0
        %366 = vmatmul.mubr.f32.gmra.mxu0 %v275
        %v367 = vpop.f32.mrf.mxu0
        %v368 = vadd.f32 %v299, %v367
        %v369 = vpop.f32.mrf.mxu0
        %370 = vdwg.mxu0
        %v371 = vtanh.pop %v368
        %s372 = scalar_lea.vmem [#allocation2], 256
        %v373 = vld [vmem:[%s372] sm:$0xff]
        %v374 = vld [vmem:[%s372 + $0x8] sm:$0xff]
        %v375 = vld [vmem:[%s372 + $0x10] sm:$0xff]
        %v376 = vld [vmem:[%s372 + $0x18] sm:$0xff]
        %v377 = vld [vmem:[%s372 + $0x20] sm:$0xff]
        %v378 = vld [vmem:[%s372 + $0x28] sm:$0xff]
        %v379 = vld [vmem:[%s372 + $0x30] sm:$0xff]
        %v380 = vld [vmem:[%s372 + $0x38] sm:$0xff]
        %v381 = vld [vmem:[%s372 + $0x40] sm:$0xff]
        %v382 = vld [vmem:[%s372 + $0x48] sm:$0xff]
        %v383 = vld [vmem:[%s372 + $0x50] sm:$0xff]
        %v384 = vld [vmem:[%s372 + $0x58] sm:$0xff]
        %v385 = vld [vmem:[%s372 + $0x60] sm:$0xff]
        %v386 = vld [vmem:[%s372 + $0x68] sm:$0xff]
        %v387 = vld [vmem:[%s372 + $0x70] sm:$0xff]
        %v388 = vld [vmem:[%s372 + $0x78] sm:$0xff]
        %s389 = scalar_lea.vmem %s2, 2
        %v390 = vld [vmem:[%s389] sm:$0x1]
        %v392 = vlaneseq
        %v393 = vshrl.u32 %v392, 7
        %v394 = vsub.s32 0, %v393
        %v395 = vrot.slane %v390, %v394
        %397 = vmatprep.subr.mxu0 0.0
        %398 = vmatpush1.msra.mxu0 %v388
        %399 = vmatprep.subr.mxu0 0.0
        %400 = vmatpush1.msra.mxu0 %v387
        %401 = vmatprep.subr.mxu0 0.0
        %402 = vmatpush1.msra.mxu0 %v386
        %403 = vmatprep.subr.mxu0 0.0
        %404 = vmatpush1.msra.mxu0 %v385
        %405 = vmatprep.subr.mxu0 0.0
        %406 = vmatpush1.msra.mxu0 %v384
        %407 = vmatprep.subr.mxu0 0.0
        %408 = vmatpush1.msra.mxu0 %v383
        %409 = vmatprep.subr.mxu0 0.0
        %410 = vmatpush1.msra.mxu0 %v382
        %411 = vmatprep.subr.mxu0 0.0
        %412 = vmatpush1.msra.mxu0 %v381
        %413 = vmatprep.subr.mxu0 0.0
        %414 = vmatpush1.msra.mxu0 %v380
        %415 = vmatprep.subr.mxu0 0.0
        %416 = vmatpush1.msra.mxu0 %v379
        %417 = vmatprep.subr.mxu0 0.0
        %418 = vmatpush1.msra.mxu0 %v378
        %419 = vmatprep.subr.mxu0 0.0
        %420 = vmatpush1.msra.mxu0 %v377
        %421 = vmatprep.subr.mxu0 0.0
        %422 = vmatpush1.msra.mxu0 %v376
        %423 = vmatprep.subr.mxu0 0.0
        %424 = vmatpush1.msra.mxu0 %v375
        %425 = vmatprep.subr.mxu0 0.0
        %426 = vmatpush1.msra.mxu0 %v374
        %427 = vmatprep.subr.mxu0 0.0
        %428 = vmatpush1.msra.mxu0 %v373
        %429 = vmatprep.subr.mxu0 0.0
        %430 = vmatpush2.msra.mxu0 0.0
        %431 = vmatprep.subr.mxu0 0.0
        %432 = vmatpush2.msra.mxu0 0.0
        %433 = vmatprep.subr.mxu0 0.0
        %434 = vmatpush2.msra.mxu0 0.0
        %435 = vmatprep.subr.mxu0 0.0
        %436 = vmatpush2.msra.mxu0 0.0
        %437 = vmatprep.subr.mxu0 0.0
        %438 = vmatpush2.msra.mxu0 0.0
        %439 = vmatprep.subr.mxu0 0.0
        %440 = vmatpush2.msra.mxu0 0.0
        %441 = vmatprep.subr.mxu0 0.0
        %442 = vmatpush2.msra.mxu0 0.0
        %443 = vmatprep.subr.mxu0 0.0
        %444 = vmatpush2.msra.mxu0 0.0
        %445 = vmatprep.subr.mxu0 0.0
        %446 = vmatpush2.msra.mxu0 0.0
        %447 = vmatprep.subr.mxu0 0.0
        %448 = vmatpush2.msra.mxu0 0.0
        %449 = vmatprep.subr.mxu0 0.0
        %450 = vmatpush2.msra.mxu0 0.0
        %451 = vmatprep.subr.mxu0 0.0
        %452 = vmatpush2.msra.mxu0 0.0
        %453 = vmatprep.subr.mxu0 0.0
        %454 = vmatpush2.msra.mxu0 0.0
        %455 = vmatprep.subr.mxu0 0.0
        %456 = vmatpush2.msra.mxu0 0.0
        %457 = vmatprep.subr.mxu0 0.0
        %458 = vmatpush2.msra.mxu0 0.0
        %459 = vmatprep.subr.mxu0 0.0
        %460 = vmatpush2.msra.mxu0 0.0
        %461 = vmatprep.mubr.f32.mxu0 0.0
        %462 = vmatmul.mubr.f32.gmra.mxu0 %v371
        %v463 = vpop.f32.mrf.mxu0
        %v464 = vadd.f32 %v395, %v463
        %v465 = vpop.f32.mrf.mxu0
        %466 = vdwg.mxu0
        %v467 = vtanh.pop %v464
        %s468 = scalar_lea.vmem [#allocation2], 384
        %v469 = vld [vmem:[%s468] sm:$0xff]
        %v470 = vld [vmem:[%s468 + $0x8] sm:$0xff]
        %v471 = vld [vmem:[%s468 + $0x10] sm:$0xff]
        %v472 = vld [vmem:[%s468 + $0x18] sm:$0xff]
        %v473 = vld [vmem:[%s468 + $0x20] sm:$0xff]
        %v474 = vld [vmem:[%s468 + $0x28] sm:$0xff]
        %v475 = vld [vmem:[%s468 + $0x30] sm:$0xff]
        %v476 = vld [vmem:[%s468 + $0x38] sm:$0xff]
        %v477 = vld [vmem:[%s468 + $0x40] sm:$0xff]
        %v478 = vld [vmem:[%s468 + $0x48] sm:$0xff]
        %v479 = vld [vmem:[%s468 + $0x50] sm:$0xff]
        %v480 = vld [vmem:[%s468 + $0x58] sm:$0xff]
        %v481 = vld [vmem:[%s468 + $0x60] sm:$0xff]
        %v482 = vld [vmem:[%s468 + $0x68] sm:$0xff]
        %v483 = vld [vmem:[%s468 + $0x70] sm:$0xff]
        %v484 = vld [vmem:[%s468 + $0x78] sm:$0xff]
        %s485 = scalar_lea.vmem %s2, 3
        %v486 = vld [vmem:[%s485] sm:$0x1]
        %v488 = vlaneseq
        %v489 = vshrl.u32 %v488, 7
        %v490 = vsub.s32 0, %v489
        %v491 = vrot.slane %v486, %v490
        %493 = vmatprep.subr.mxu0 0.0
        %494 = vmatpush1.msra.mxu0 %v484
        %495 = vmatprep.subr.mxu0 0.0
        %496 = vmatpush1.msra.mxu0 %v483
        %497 = vmatprep.subr.mxu0 0.0
        %498 = vmatpush1.msra.mxu0 %v482
        %499 = vmatprep.subr.mxu0 0.0
        %500 = vmatpush1.msra.mxu0 %v481
        %501 = vmatprep.subr.mxu0 0.0
        %502 = vmatpush1.msra.mxu0 %v480
        %503 = vmatprep.subr.mxu0 0.0
        %504 = vmatpush1.msra.mxu0 %v479
        %505 = vmatprep.subr.mxu0 0.0
        %506 = vmatpush1.msra.mxu0 %v478
        %507 = vmatprep.subr.mxu0 0.0
        %508 = vmatpush1.msra.mxu0 %v477
        %509 = vmatprep.subr.mxu0 0.0
        %510 = vmatpush1.msra.mxu0 %v476
        %511 = vmatprep.subr.mxu0 0.0
        %512 = vmatpush1.msra.mxu0 %v475
        %513 = vmatprep.subr.mxu0 0.0
        %514 = vmatpush1.msra.mxu0 %v474
        %515 = vmatprep.subr.mxu0 0.0
        %516 = vmatpush1.msra.mxu0 %v473
        %517 = vmatprep.subr.mxu0 0.0
        %518 = vmatpush1.msra.mxu0 %v472
        %519 = vmatprep.subr.mxu0 0.0
        %520 = vmatpush1.msra.mxu0 %v471
        %521 = vmatprep.subr.mxu0 0.0
        %522 = vmatpush1.msra.mxu0 %v470
        %523 = vmatprep.subr.mxu0 0.0
        %524 = vmatpush1.msra.mxu0 %v469
        %525 = vmatprep.subr.mxu0 0.0
        %526 = vmatpush2.msra.mxu0 0.0
        %527 = vmatprep.subr.mxu0 0.0
        %528 = vmatpush2.msra.mxu0 0.0
        %529 = vmatprep.subr.mxu0 0.0
        %530 = vmatpush2.msra.mxu0 0.0
        %531 = vmatprep.subr.mxu0 0.0
        %532 = vmatpush2.msra.mxu0 0.0
        %533 = vmatprep.subr.mxu0 0.0
        %534 = vmatpush2.msra.mxu0 0.0
        %535 = vmatprep.subr.mxu0 0.0
        %536 = vmatpush2.msra.mxu0 0.0
        %537 = vmatprep.subr.mxu0 0.0
        %538 = vmatpush2.msra.mxu0 0.0
        %539 = vmatprep.subr.mxu0 0.0
        %540 = vmatpush2.msra.mxu0 0.0
        %541 = vmatprep.subr.mxu0 0.0
        %542 = vmatpush2.msra.mxu0 0.0
        %543 = vmatprep.subr.mxu0 0.0
        %544 = vmatpush2.msra.mxu0 0.0
        %545 = vmatprep.subr.mxu0 0.0
        %546 = vmatpush2.msra.mxu0 0.0
        %547 = vmatprep.subr.mxu0 0.0
        %548 = vmatpush2.msra.mxu0 0.0
        %549 = vmatprep.subr.mxu0 0.0
        %550 = vmatpush2.msra.mxu0 0.0
        %551 = vmatprep.subr.mxu0 0.0
        %552 = vmatpush2.msra.mxu0 0.0
        %553 = vmatprep.subr.mxu0 0.0
        %554 = vmatpush2.msra.mxu0 0.0
        %555 = vmatprep.subr.mxu0 0.0
        %556 = vmatpush2.msra.mxu0 0.0
        %557 = vmatprep.mubr.f32.mxu0 0.0
        %558 = vmatmul.mubr.f32.gmra.mxu0 %v467
        %v559 = vpop.f32.mrf.mxu0
        %v560 = vadd.f32 %v491, %v559
        %v561 = vpop.f32.mrf.mxu0
        %562 = vdwg.mxu0
        %563 = vst [vmem:[%s180] sm:$0xff] %v560
        %p564 = scmp.lt.s32.totalorder %s15, 1
        %s565 = scalar_select %p564, %s15, 1
        %s566 = smul.addr %s565, 8
        %s567 = scalar_lea.vmem %s3, %s566
        // Predicated region
        $region37: #{mlp_net_forward.1} parent=31 // pred_check
          %p568 = pneg %p101
        $region38: #{mlp_net_forward.1} parent=31 // pred_check_branch
          %570 = sbr.rel (%p568) target = $region40
        $region39: #{mlp_net_forward.1} parent=31 // pred_region
          _
        $region40: #{mlp_net_forward.1} parent=31 // pred_fallthru
          _
      $region32: #{mlp_net_forward.1} parent=5 // pred_fallthru
        _
      %p571 = scmp.le.s32.totalorder 2, %s10
      // Predicated region
      $region41: #{mlp_net_forward.1} parent=5 // pred_check
        %p572 = pneg %p571
      $region42: #{mlp_net_forward.1} parent=5 // pred_check_branch
        %574 = sbr.rel (%p572) target = $region44
      $region43: #{mlp_net_forward.1} parent=5 // pred_region
        %s575 = ssub.s32 %s10, 2
        // Predicated region
        $region45: #{mlp_net_forward.1} parent=43 // pred_check
          %p576 = pneg %p107
        $region46: #{mlp_net_forward.1} parent=43 // pred_check_branch
          %578 = sbr.rel (%p576) target = $region48
        $region47: #{mlp_net_forward.1} parent=43 // pred_region
          %p579 = scmp.lt.s32.totalorder %s16, 1
          %s580 = scalar_select %p579, %s16, 1
          %s581 = smul.addr %s580, 8
          %s582 = scalar_lea.vmem %s3, %s581
        $region48: #{mlp_net_forward.1} parent=43 // pred_fallthru
          _
      $region44: #{mlp_net_forward.1} parent=5 // pred_fallthru
        _
    $region6: #{mlp_net_forward.1} parent=1 // loop_footer
      %s14 = sadd.s32 1, %s10
    $region7: #{mlp_net_forward.1} parent=1 // loop_footer_branch
      %9 = sbr.rel target = $region3
    $region8: #{mlp_net_forward.1} parent=1 // loop_exit
      _
    %583 = vsyncpa [#allocation3], 1
    %s584 = scalar_lea.sflag [#allocation3], 1
    %585 = vsyncpa %s584, 1

</llo_original>
